<compile_context>
chip_gen: v6e
topology: v6e:2x2x1
jax: 0.10.0
libtpu: 0.0.40
codegen_flags: <defaults>
</compile_context>

<pallas_src>
import jax
import jax.numpy as jnp
from jax.experimental import pallas as pl
from jax.experimental.pallas import tpu as pltpu


def _num_tensorcores():
    """Best-effort count of TensorCores one pallas_call can shard across."""
    try:
        kind = jax.devices()[0].device_kind.lower()
    except Exception:
        return 1
    for tag in ("v7", "7x", "v4", "v5p"):
        if tag in kind:
            return 2
    return 1


def _make_dice_kernel(dim1_total, dim1_block, num_splits, steps_per_split):
    """Kernel shared by the lane-dense (3-D block) and flat (2-D block) paths.

    dim1_total / dim1_block describe axis 1 of the block (rows of the (R,128)
    view, or flattened features) so padded tail chunks can be masked in-kernel.
    """
    covered = num_splits * steps_per_split * dim1_block
    needs_mask = covered != dim1_total  # static: only trace the mask if needed

    def kernel(m1_ref, m2_ref, inter_ref, s12_ref, inter_acc, s12_acc):
        k = pl.program_id(1)

        @pl.when(k == 0)
        def _init():
            inter_acc[...] = jnp.zeros_like(inter_acc)
            s12_acc[...] = jnp.zeros_like(s12_acc)

        # Upcast in-kernel only; HBM traffic stays at the native dtype width.
        m1 = m1_ref[...].astype(jnp.float32)
        m2 = m2_ref[...].astype(jnp.float32)

        if needs_mask:
            s = pl.program_id(0)
            chunk = s * steps_per_split + k          # UNclamped global chunk id
            idx = jax.lax.broadcasted_iota(jnp.int32, m1.shape, 1) + chunk * dim1_block
            valid = idx < dim1_total
            m1 = jnp.where(valid, m1, 0.0)
            m2 = jnp.where(valid, m2, 0.0)

        prod = m1 * m2
        both = m1 + m2
        # Reduce the block down to small per-sample partials and accumulate.
        if m1.ndim == 3:                              # (N, RB, 128) -> (N, 128)
            inter_acc[...] += jnp.sum(prod, axis=1)
            s12_acc[...] += jnp.sum(both, axis=1)
        else:                                         # (N, TD)      -> (N, 1)
            inter_acc[...] += jnp.sum(prod, axis=1, keepdims=True)
            s12_acc[...] += jnp.sum(both, axis=1, keepdims=True)

        @pl.when(k == pl.num_programs(1) - 1)
        def _finalize():
            inter_ref[...] = inter_acc[...].reshape(inter_ref.shape)
            s12_ref[...] = s12_acc[...].reshape(s12_ref.shape)

    return kernel


def dice_loss(inp, tgt, *, block_bytes=2 * 1024 * 1024, num_splits=None):
    """Pallas TPU DiceLoss forward. inp/tgt: (N, ...) -> scalar f32 loss."""
    n = tgt.shape[0]
    m1 = inp.reshape(n, -1)          # row-major reshape: metadata only
    m2 = tgt.reshape(n, -1)
    # bool blocks are awkward to lower; int8 keeps the 1-byte HBM footprint.
    if m1.dtype == jnp.bool_:
        m1 = m1.astype(jnp.int8)
    if m2.dtype == jnp.bool_:
        m2 = m2.astype(jnp.int8)
    d = m1.shape[1]

    # ~block_bytes per input per buffer; with double buffering that is
    # 2 inputs x 2 buffers x 2 MiB = 8 MiB + tiny accumulators -> fits the
    # default scoped VMEM on v5e/v6e/v7x while sitting near the HBM roofline.
    itemsize = max(m1.dtype.itemsize, m2.dtype.itemsize)
    block_elems = max(block_bytes // itemsize, 8 * 128)

    if num_splits is None:
        num_splits = _num_tensorcores()

    if d % 128 == 0:
        # Lane-dense path: (N, D) -> (N, R, 128) view, blocks (N, RB, 128).
        r = d // 128
        max_rb = max(8, (block_elems // (n * 128)) // 8 * 8)
        rb = r if r <= max_rb else max_rb            # rb == R or a multiple of 8
        kb = pl.cdiv(r, rb)
        a = m1.reshape(n, r, 128)
        b = m2.reshape(n, r, 128)
        block = (n, rb, 128)
        dim1_total, dim1_block = r, rb
        out_lanes = 128
        acc_shape = (n, 128)
    else:
        # Flat fallback: (N, TD) blocks; partial tail masked in-kernel.
        max_td = max(128, (block_elems // max(n, 1)) // 128 * 128)
        td = d if d <= max_td else max_td
        kb = pl.cdiv(d, td)
        a, b = m1, m2
        block = (n, td)
        dim1_total, dim1_block = d, td
        out_lanes = 1
        acc_shape = (n, 1)

    num_splits = max(1, min(num_splits, kb))
    spp = pl.cdiv(kb, num_splits)                    # reduction steps per split
    last = kb - 1

    if len(block) == 3:
        in_map = lambda s, k: (0, jnp.minimum(s * spp + k, last), 0)
    else:
        in_map = lambda s, k: (0, jnp.minimum(s * spp + k, last))
    out_map = lambda s, k: (s, 0, 0)
    out_block = (1, n, out_lanes)
    out_shape = jax.ShapeDtypeStruct((num_splits, n, out_lanes), jnp.float32)

    kernel = _make_dice_kernel(dim1_total, dim1_block, num_splits, spp)

    inter_parts, s12_parts = pl.pallas_call(
        kernel,
        out_shape=(out_shape, out_shape),
        grid_spec=pltpu.PrefetchScalarGridSpec(
            num_scalar_prefetch=0,
            grid=(num_splits, spp),
            in_specs=[
                pl.BlockSpec(block, in_map),
                pl.BlockSpec(block, in_map),
            ],
            out_specs=[
                pl.BlockSpec(out_block, out_map),
                pl.BlockSpec(out_block, out_map),
            ],
            scratch_shapes=[
                pltpu.VMEM(acc_shape, jnp.float32),   # sum(m1*m2) partials
                pltpu.VMEM(acc_shape, jnp.float32),   # sum(m1+m2) partials
            ],
        ),
        compiler_params=pltpu.CompilerParams(
            dimension_semantics=("parallel", "arbitrary")),
    )(a, b)

    # Tiny epilogue on (num_splits, N, out_lanes) partials (a few KiB at most).
    smooth = jnp.float32(1.0)
    inter = jnp.sum(inter_parts, axis=(0, 2))        # (N,)
    s12 = jnp.sum(s12_parts, axis=(0, 2))            # (N,)
    score = (2.0 * inter + smooth) / (s12 + smooth)
    return 1.0 - jnp.sum(score) / n


def _dice_loss_ref(inp, tgt):
    n = tgt.shape[0]
    smooth = 1.0
    m1 = inp.reshape(n, -1).astype(jnp.float32)
    m2 = tgt.reshape(n, -1).astype(jnp.float32)
    inter = jnp.sum(m1 * m2, axis=1)
    score = (2.0 * inter + smooth) / (
        jnp.sum(m1, axis=1) + jnp.sum(m2, axis=1) + smooth)
    return 1.0 - jnp.sum(score) / n


if __name__ == "__main__":
    key = jax.random.PRNGKey(0)
    k1, k2 = jax.random.split(key)
    # (N, C, H, W) segmentation-style inputs; D = C*H*W = 1024 -> dense path.
    x = jax.random.uniform(k1, (2, 4, 16, 16), dtype=jnp.float32)           # predictions
    t = (jax.random.uniform(k2, (2, 4, 16, 16)) > 0.5).astype(jnp.float32)  # binary mask

    loss = jax.jit(dice_loss)(x, t)
    jax.block_until_ready(loss)

    ref = _dice_loss_ref(x, t)
    assert jnp.allclose(loss, ref, atol=1e-5, rtol=1e-5), (loss, ref)

    print("KERNEL_OK")
</pallas_src>

<mosaic_0001>
module attributes {stable_mosaic.version = 11 : i64} {
  func.func @kernel(%arg0: i32, %arg1: i32, %arg2: memref<2x8x128xf32, #tpu.memory_space<vmem>>, %arg3: memref<2x8x128xf32, #tpu.memory_space<vmem>>, %arg4: memref<1x2x128xf32, #tpu.memory_space<vmem>>, %arg5: memref<1x2x128xf32, #tpu.memory_space<vmem>>, %arg6: memref<2x128xf32, #tpu.memory_space<vmem>>, %arg7: memref<2x128xf32, #tpu.memory_space<vmem>>) attributes {dimension_semantics = [#tpu.dimension_semantics<parallel>, #tpu.dimension_semantics<arbitrary>], iteration_bounds = array<i64: 1, 1>, scalar_prefetch = 0 : i64, scratch_operands = 2 : i64, tpu.core_type = #tpu.core_type<tc>, window_params = [{transform_indices = @transform_0, window_bounds = array<i64: 2, 8, 128>}, {transform_indices = @transform_1, window_bounds = array<i64: 2, 8, 128>}, {transform_indices = @transform_2, window_bounds = array<i64: 1, 2, 128>}, {transform_indices = @transform_3, window_bounds = array<i64: 1, 2, 128>}]} {
    %c0_i32 = arith.constant 0 : i32
    %0 = arith.cmpi eq, %arg1, %c0_i32 : i32
    %1 = arith.extui %0 : i1 to i32
    %c0_i32_0 = arith.constant 0 : i32
    %2 = arith.cmpi ne, %1, %c0_i32_0 : i32
    scf.if %2 {
      %cst_17 = arith.constant 0.000000e+00 : f32
      %18 = vector.broadcast %cst_17 : f32 to vector<2x128xf32>
      %c0_18 = arith.constant 0 : index
      %c0_19 = arith.constant 0 : index
      %19 = vector.load %arg6[%c0_18, %c0_19] : memref<2x128xf32, #tpu.memory_space<vmem>>, vector<2x128xf32>
      tpu.vector_store %arg6[%c0_18, %c0_19], %18 {strides = array<i32>} : memref<2x128xf32, #tpu.memory_space<vmem>>, vector<2x128xf32>,
      %cst_20 = arith.constant 0.000000e+00 : f32
      %20 = vector.broadcast %cst_20 : f32 to vector<2x128xf32>
      %c0_21 = arith.constant 0 : index
      %c0_22 = arith.constant 0 : index
      %21 = vector.load %arg7[%c0_21, %c0_22] : memref<2x128xf32, #tpu.memory_space<vmem>>, vector<2x128xf32>
      tpu.vector_store %arg7[%c0_21, %c0_22], %20 {strides = array<i32>} : memref<2x128xf32, #tpu.memory_space<vmem>>, vector<2x128xf32>,
    } else {
    }
    %c0 = arith.constant 0 : index
    %c0_1 = arith.constant 0 : index
    %c0_2 = arith.constant 0 : index
    %3 = vector.load %arg2[%c0, %c0_1, %c0_2] : memref<2x8x128xf32, #tpu.memory_space<vmem>>, vector<2x8x128xf32>
    %c0_3 = arith.constant 0 : index
    %c0_4 = arith.constant 0 : index
    %c0_5 = arith.constant 0 : index
    %4 = vector.load %arg3[%c0_3, %c0_4, %c0_5] : memref<2x8x128xf32, #tpu.memory_space<vmem>>, vector<2x8x128xf32>
    %5 = arith.mulf %3, %4 : vector<2x8x128xf32>
    %6 = arith.addf %3, %4 : vector<2x8x128xf32>
    %c0_6 = arith.constant 0 : index
    %c0_7 = arith.constant 0 : index
    %7 = vector.load %arg6[%c0_6, %c0_7] : memref<2x128xf32, #tpu.memory_space<vmem>>, vector<2x128xf32>
    %cst = arith.constant dense<0.000000e+00> : vector<2x128xf32>
    %8 = vector.multi_reduction <add>, %5, %cst [1] : vector<2x8x128xf32> to vector<2x128xf32>
    %9 = arith.addf %7, %8 : vector<2x128xf32>
    %c0_8 = arith.constant 0 : index
    %c0_9 = arith.constant 0 : index
    %10 = vector.load %arg6[%c0_8, %c0_9] : memref<2x128xf32, #tpu.memory_space<vmem>>, vector<2x128xf32>
    tpu.vector_store %arg6[%c0_8, %c0_9], %9 {strides = array<i32>} : memref<2x128xf32, #tpu.memory_space<vmem>>, vector<2x128xf32>,
    %c0_10 = arith.constant 0 : index
    %c0_11 = arith.constant 0 : index
    %11 = vector.load %arg7[%c0_10, %c0_11] : memref<2x128xf32, #tpu.memory_space<vmem>>, vector<2x128xf32>
    %cst_12 = arith.constant dense<0.000000e+00> : vector<2x128xf32>
    %12 = vector.multi_reduction <add>, %6, %cst_12 [1] : vector<2x8x128xf32> to vector<2x128xf32>
    %13 = arith.addf %11, %12 : vector<2x128xf32>
    %c0_13 = arith.constant 0 : index
    %c0_14 = arith.constant 0 : index
    %14 = vector.load %arg7[%c0_13, %c0_14] : memref<2x128xf32, #tpu.memory_space<vmem>>, vector<2x128xf32>
    tpu.vector_store %arg7[%c0_13, %c0_14], %13 {strides = array<i32>} : memref<2x128xf32, #tpu.memory_space<vmem>>, vector<2x128xf32>,
    %c0_i32_15 = arith.constant 0 : i32
    %15 = arith.cmpi eq, %arg1, %c0_i32_15 : i32
    %16 = arith.extui %15 : i1 to i32
    %c0_i32_16 = arith.constant 0 : i32
    %17 = arith.cmpi ne, %16, %c0_i32_16 : i32
    scf.if %17 {
      %c0_17 = arith.constant 0 : index
      %c0_18 = arith.constant 0 : index
      %18 = vector.load %arg6[%c0_17, %c0_18] : memref<2x128xf32, #tpu.memory_space<vmem>>, vector<2x128xf32>
      %19 = vector.shape_cast %18 : vector<2x128xf32> to vector<1x2x128xf32>
      %c0_19 = arith.constant 0 : index
      %c0_20 = arith.constant 0 : index
      %c0_21 = arith.constant 0 : index
      %20 = vector.load %arg4[%c0_19, %c0_20, %c0_21] : memref<1x2x128xf32, #tpu.memory_space<vmem>>, vector<1x2x128xf32>
      tpu.vector_store %arg4[%c0_19, %c0_20, %c0_21], %19 {strides = array<i32>} : memref<1x2x128xf32, #tpu.memory_space<vmem>>, vector<1x2x128xf32>,
      %c0_22 = arith.constant 0 : index
      %c0_23 = arith.constant 0 : index
      %21 = vector.load %arg7[%c0_22, %c0_23] : memref<2x128xf32, #tpu.memory_space<vmem>>, vector<2x128xf32>
      %22 = vector.shape_cast %21 : vector<2x128xf32> to vector<1x2x128xf32>
      %c0_24 = arith.constant 0 : index
      %c0_25 = arith.constant 0 : index
      %c0_26 = arith.constant 0 : index
      %23 = vector.load %arg5[%c0_24, %c0_25, %c0_26] : memref<1x2x128xf32, #tpu.memory_space<vmem>>, vector<1x2x128xf32>
      tpu.vector_store %arg5[%c0_24, %c0_25, %c0_26], %22 {strides = array<i32>} : memref<1x2x128xf32, #tpu.memory_space<vmem>>, vector<1x2x128xf32>,
    } else {
    }
    return
  }
  func.func @transform_0(%arg0: i32, %arg1: i32) -> (i32, i32, i32) {
    %c1_i32 = arith.constant 1 : i32
    %0 = arith.muli %arg0, %c1_i32 : i32
    %1 = arith.addi %0, %arg1 : i32
    %c0_i32 = arith.constant 0 : i32
    %2 = arith.minsi %1, %c0_i32 : i32
    %c0_i32_0 = arith.constant 0 : i32
    %c0_i32_1 = arith.constant 0 : i32
    %c0_i32_2 = arith.constant 0 : i32
    return %c0_i32_0, %2, %c0_i32_1 : i32, i32, i32
  }
  func.func @transform_1(%arg0: i32, %arg1: i32) -> (i32, i32, i32) {
    %c1_i32 = arith.constant 1 : i32
    %0 = arith.muli %arg0, %c1_i32 : i32
    %1 = arith.addi %0, %arg1 : i32
    %c0_i32 = arith.constant 0 : i32
    %2 = arith.minsi %1, %c0_i32 : i32
    %c0_i32_0 = arith.constant 0 : i32
    %c0_i32_1 = arith.constant 0 : i32
    %c0_i32_2 = arith.constant 0 : i32
    return %c0_i32_0, %2, %c0_i32_1 : i32, i32, i32
  }
  func.func @transform_2(%arg0: i32, %arg1: i32) -> (i32, i32, i32) {
    %c0_i32 = arith.constant 0 : i32
    %c0_i32_0 = arith.constant 0 : i32
    %c0_i32_1 = arith.constant 0 : i32
    return %arg0, %c0_i32, %c0_i32_0 : i32, i32, i32
  }
  func.func @transform_3(%arg0: i32, %arg1: i32) -> (i32, i32, i32) {
    %c0_i32 = arith.constant 0 : i32
    %c0_i32_0 = arith.constant 0 : i32
    %c0_i32_1 = arith.constant 0 : i32
    return %arg0, %c0_i32, %c0_i32_0 : i32, i32, i32
  }
}

</mosaic_0001>

<llo_original>
// kernel: dice_loss.1
$region0: #{dice_loss.1}
  #allocation0 [shape = 'u32[]', space=smem, size = 0x4, offset = 0x4, fixed_abs, tag = 'smem constant byte address 0x4 - core index']
  #allocation1 [shape = 'u32[144,128]{1,0:T(1,128)}', space=vmem, size = 0x12000, scoped, tag = 'internal scratch']
  #allocation2 [shape = 'f32[2,128]{1,0:T(2,128)}', space=vmem, size = 0x400, scoped, tag = 'scratch operand']
  #allocation3 [shape = 'f32[2,128]{1,0:T(2,128)}', space=vmem, size = 0x400, scoped, tag = 'scratch operand']
  %s0 = inlined_call_operand.vmem [shape: f32[2,8,128], index: 0, kind: input, shape index: {}]
  %s1 = inlined_call_operand.vmem [shape: f32[2,8,128], index: 1, kind: input, shape index: {}]
  %s2 = inlined_call_operand.vmem [shape: f32[1,2,128], index: 2, kind: output, shape index: {0}]
  %s3 = inlined_call_operand.vmem [shape: f32[1,2,128], index: 3, kind: output, shape index: {1}]
  %4 = xla_tuple %s2, %s3
  %s5 = sld [smem:[#allocation0]]
  $region34: #{dice_loss.1} parent=0
    _
  %s7 = ssub.s32 1, %s5
  %s8 = scalar_select 0, %s7, %s5
  // Predicated region
  $region2: #{dice_loss.1} parent=0 // pred_check
    _
  $region3: #{dice_loss.1} parent=0 // pred_check_branch
    %10 = sbr.rel (0) target = $region5
  $region4: #{dice_loss.1} parent=0 // pred_region
    %s11 = sadd.s32 0, 0
    %p12 = scmp.lt.s32.totalorder %s11, 0
    %s13 = scalar_select %p12, %s11, 0
    %p14 = scmp.lt.s32.totalorder %s13, 0
    %s15 = scalar_select %p14, %s13, 0
    %s16 = smul.addr %s15, 8
    %s17 = scalar_lea.vmem %s0, %s16
    %s18 = sadd.s32 0, 0
    %p19 = scmp.lt.s32.totalorder %s18, 0
    %s20 = scalar_select %p19, %s18, 0
  $region5: #{dice_loss.1} parent=0 // pred_fallthru
    _
  // Predicated region
  $region6: #{dice_loss.1} parent=0 // pred_check
    _
  $region7: #{dice_loss.1} parent=0 // pred_check_branch
    %22 = sbr.rel (0) target = $region9
  $region8: #{dice_loss.1} parent=0 // pred_region
    %s23 = sadd.s32 0, 0
    %p24 = scmp.lt.s32.totalorder %s23, 0
    %s25 = scalar_select %p24, %s23, 0
    %p26 = scmp.lt.s32.totalorder %s25, 0
    %s27 = scalar_select %p26, %s25, 0
    %s28 = smul.addr %s27, 8
    %s29 = scalar_lea.vmem %s1, %s28
    %s30 = sadd.s32 0, 0
    %p31 = scmp.lt.s32.totalorder %s30, 0
    %s32 = scalar_select %p31, %s30, 0
  $region9: #{dice_loss.1} parent=0 // pred_fallthru
    _
  %s33 = sadd.s32 0, 0
  %p34 = scmp.lt.s32.totalorder %s33, 0
  %s35 = scalar_select %p34, %s33, 0
  %p36 = scmp.lt.s32.totalorder %s35, 0
  %s37 = scalar_select %p36, %s35, 0
  %s38 = smul.addr %s37, 8
  %s39 = scalar_lea.vmem %s0, %s38
  %s40 = sadd.s32 0, 0
  %p41 = scmp.lt.s32.totalorder %s40, 0
  %s42 = scalar_select %p41, %s40, 0
  %p43 = scmp.lt.s32.totalorder %s42, 0
  %s44 = scalar_select %p43, %s42, 0
  %s45 = smul.addr %s44, 8
  %s46 = scalar_lea.vmem %s1, %s45
  %s47 = sadd.s32 0, 0
  %p48 = scmp.lt.s32.totalorder %s47, 0
  %s49 = scalar_select %p48, %s47, 0
  %p50 = scmp.lt.s32.totalorder %s49, 0
  %s51 = scalar_select %p50, %s49, 0
  %s52 = smul.addr %s51, 8
  %s53 = scalar_lea.vmem %s0, %s52
  %s54 = sadd.s32 0, 0
  %p55 = scmp.lt.s32.totalorder %s54, 0
  %s56 = scalar_select %p55, %s54, 0
  %s57 = sadd.s32 0, 0
  %p58 = scmp.lt.s32.totalorder %s57, 0
  %s59 = scalar_select %p58, %s57, 0
  %p60 = scmp.lt.s32.totalorder %s59, 0
  %s61 = scalar_select %p60, %s59, 0
  %s62 = smul.addr %s61, 8
  %s63 = scalar_lea.vmem %s1, %s62
  %s64 = sadd.s32 0, 0
  %p65 = scmp.lt.s32.totalorder %s64, 0
  %s66 = scalar_select %p65, %s64, 0
  %p67 = scmp.eq.s32.totalorder 0, 0
  // Predicated region
  $region10: #{dice_loss.1} parent=0 // pred_check
    %p68 = pneg %p67
  $region11: #{dice_loss.1} parent=0 // pred_check_branch
    %70 = sbr.rel (%p68) target = $region13
  $region12: #{dice_loss.1} parent=0 // pred_region
    %71 = vst [vmem:[#allocation2] sm:$0x3] 0.0
    %72 = vst [vmem:[#allocation3] sm:$0x3] 0.0
  $region13: #{dice_loss.1} parent=0 // pred_fallthru
    _
  %v73 = vld [vmem:[%s53] sm:$0xff]
  %v74 = vld [vmem:[%s53 + $0x8] sm:$0xff]
  %v75 = vld [vmem:[%s63] sm:$0xff]
  %v76 = vld [vmem:[%s63 + $0x8] sm:$0xff]
  %v77 = vmul.f32 %v73, %v75
  %v78 = vmul.f32 %v74, %v76
  %v79 = vadd.f32 %v73, %v75
  %v80 = vadd.f32 %v74, %v76
  %v81 = vld [vmem:[#allocation2] sm:$0x3]
  %v82 = vrot.slane %v77, 4
  %v83 = vadd.f32 %v77, %v82
  %v84 = vrot.slane %v83, 2
  %v85 = vadd.f32 %v83, %v84
  %v86 = vrot.slane %v85, 1
  %v87 = vadd.f32 %v85, %v86
  %v88 = vrot.slane %v78, 4
  %v89 = vadd.f32 %v78, %v88
  %v90 = vrot.slane %v89, 2
  %v91 = vadd.f32 %v89, %v90
  %v92 = vrot.slane %v91, 1
  %v93 = vadd.f32 %v91, %v92
  %vm96 = vcmask 1041409
  %v97 = vsel %vm96, %v93, %v87
  %v99 = vadd.f32 %v81, %v97
  %100 = vst [vmem:[#allocation2] sm:$0x3] %v99
  %v101 = vld [vmem:[#allocation3] sm:$0x3]
  %v102 = vrot.slane %v79, 4
  %v103 = vadd.f32 %v79, %v102
  %v104 = vrot.slane %v103, 2
  %v105 = vadd.f32 %v103, %v104
  %v106 = vrot.slane %v105, 1
  %v107 = vadd.f32 %v105, %v106
  %v108 = vrot.slane %v80, 4
  %v109 = vadd.f32 %v80, %v108
  %v110 = vrot.slane %v109, 2
  %v111 = vadd.f32 %v109, %v110
  %v112 = vrot.slane %v111, 1
  %v113 = vadd.f32 %v111, %v112
  %v116 = vsel %vm96, %v113, %v107
  %v118 = vadd.f32 %v101, %v116
  %119 = vst [vmem:[#allocation3] sm:$0x3] %v118
  // Predicated region
  $region14: #{dice_loss.1} parent=0 // pred_check
    %p120 = pneg %p67
  $region15: #{dice_loss.1} parent=0 // pred_check_branch
    %122 = sbr.rel (%p120) target = $region17
  $region16: #{dice_loss.1} parent=0 // pred_region
    %v123 = vld [vmem:[#allocation2] sm:$0x3]
    %124 = vst [vmem:[%s2] sm:$0x3] %v123
    %v125 = vld [vmem:[#allocation3] sm:$0x3]
    %126 = vst [vmem:[%s3] sm:$0x3] %v125
  $region17: #{dice_loss.1} parent=0 // pred_fallthru
    _
  // Predicated region
  $region18: #{dice_loss.1} parent=0 // pred_check
    _
  $region19: #{dice_loss.1} parent=0 // pred_check_branch
    %128 = sbr.rel (0) target = $region21
  $region20: #{dice_loss.1} parent=0 // pred_region
    _
  $region21: #{dice_loss.1} parent=0 // pred_fallthru
    _
  // Predicated region
  $region22: #{dice_loss.1} parent=0 // pred_check
    _
  $region23: #{dice_loss.1} parent=0 // pred_check_branch
    %130 = sbr.rel (0) target = $region25
  $region24: #{dice_loss.1} parent=0 // pred_region
    _
  $region25: #{dice_loss.1} parent=0 // pred_fallthru
    _
  // Predicated region
  $region26: #{dice_loss.1} parent=0 // pred_check
    _
  $region27: #{dice_loss.1} parent=0 // pred_check_branch
    %132 = sbr.rel (0) target = $region29
  $region28: #{dice_loss.1} parent=0 // pred_region
    _
  $region29: #{dice_loss.1} parent=0 // pred_fallthru
    _
  // Predicated region
  $region30: #{dice_loss.1} parent=0 // pred_check
    _
  $region31: #{dice_loss.1} parent=0 // pred_check_branch
    %134 = sbr.rel (0) target = $region33
  $region32: #{dice_loss.1} parent=0 // pred_region
    _
  $region33: #{dice_loss.1} parent=0 // pred_fallthru
    _

</llo_original>
